<compile_context>
chip_gen: v5e
topology: v5e:2x2
jax: 0.10.0
libtpu: 0.0.40
codegen_flags: <defaults>
</compile_context>

<pallas_src>
import functools

import jax
import jax.numpy as jnp
from jax.experimental import pallas as pl
from jax.experimental.pallas import tpu as pltpu

EPS = 1e-5          # PyTorch InstanceNorm2d default
LANE_PAD = 128      # aligned zero pad on each side of the flattened spatial dim


def _block_kernel(x_ref, w_ref, o_ref, *, Nb, H, W, KH, KW, pad, matmul_dtype):
    # x_ref: (Nb, Cin_pad, H*W)          Nb samples, channels x flat spatial
    # w_ref: (Cout, KH*KW*Cin_pad)       conv weights, tap-major / channel-minor
    # o_ref: (Nb, Cout, H*W)             output (lane-dense: H*W in lanes)
    Cin = x_ref.shape[1]
    HW = H * W
    NHW = Nb * HW

    # Lane-concatenate the Nb samples into one (Cin, Nb*HW) slab.  HW is a
    # multiple of 128, so this is aligned whole-tile stacking along lanes.
    if Nb == 1:
        x = x_ref[0]
    else:
        x = jnp.concatenate([x_ref[i] for i in range(Nb)], axis=1)

    # Fused zero padding: aligned concat of whole lane tiles (no HBM pad pass).
    zpad = jnp.zeros((Cin, LANE_PAD), dtype=x.dtype)
    xf = jnp.concatenate([zpad, x, zpad], axis=1)     # (Cin, 2*LANE_PAD + NHW)

    # Hoisted boundary masks (computed once, reused across taps).
    lane = jax.lax.broadcasted_iota(jnp.int32, (Cin, NHW), 1)
    col = lane % W
    col_masks = {}
    for kw in range(KW):
        dw = kw - pad
        if dw < 0:
            col_masks[dw] = col >= -dw
        elif dw > 0:
            col_masks[dw] = col < W - dw
    row_masks = {}
    if Nb > 1:
        # Row masks isolate vertically-adjacent samples that share the lane
        # axis.  With Nb == 1 the LANE_PAD zeros already handle top/bottom rows.
        row = (lane // W) % H
        for kh in range(KH):
            dh = kh - pad
            if dh < 0:
                row_masks[dh] = row >= -dh
            elif dh > 0:
                row_masks[dh] = row < H - dh

    # Build the (KH*KW*Cin, Nb*HW) patch matrix with static lane-offset slices.
    taps = []
    for kh in range(KH):
        dh = kh - pad
        for kw in range(KW):
            dw = kw - pad
            s = dh * W + dw                            # flat shift of this tap
            patch = xf[:, LANE_PAD + s: LANE_PAD + s + NHW]   # (Cin, NHW)
            mask = None
            if dw in col_masks:
                mask = col_masks[dw]
            if dh in row_masks:
                mask = row_masks[dh] if mask is None else jnp.logical_and(
                    mask, row_masks[dh])
            if mask is not None:
                patch = jnp.where(mask, patch, 0.0)
            taps.append(patch)
    patches = jnp.concatenate(taps, axis=0)            # (KH*KW*Cin, NHW)

    # Conv2d as one MXU matmul: (Cout, KH*KW*Cin) @ (KH*KW*Cin, Nb*HW).
    w = w_ref[...]
    if matmul_dtype != jnp.float32:
        w = w.astype(matmul_dtype)
        patches = patches.astype(matmul_dtype)
    acc = jnp.dot(w, patches,
                  preferred_element_type=jnp.float32)  # (Cout, NHW) f32

    # InstanceNorm2d (per sample & channel over H*W; biased var, eps=1e-5,
    # no affine) + ReLU.  Conv bias omitted: cancelled by mean subtraction.
    for i in range(Nb):
        a = acc[:, i * HW:(i + 1) * HW] if Nb > 1 else acc   # (Cout, HW) f32
        mean = jnp.mean(a, axis=1, keepdims=True)
        cen = a - mean
        var = jnp.mean(cen * cen, axis=1, keepdims=True)
        y = cen * jax.lax.rsqrt(var + EPS)
        o_ref[i] = jnp.maximum(y, 0.0).astype(o_ref.dtype)


def block_forward(x_nchw, w_oihw, bias=None, *, padding=1,
                  samples_per_step=None, matmul_dtype=jnp.float32):
    """Conv2d(k=3, s=1, p=padding) + InstanceNorm2d + ReLU.  NCHW in/out."""
    del bias  # per-channel conv bias cancels exactly under InstanceNorm (no affine)
    N, Cin, H, W = x_nchw.shape
    Cout, _, KH, KW = w_oihw.shape
    HW = H * W
    assert padding * (W + 1) <= LANE_PAD, "increase LANE_PAD for this W/padding"
    assert (KH - 1 - padding) * W + (KW - 1 - padding) <= LANE_PAD

    # Samples per grid step: amortize per-step overhead, but keep the leading
    # "parallel" grid axis length >= 2 so both v7x TensorCores get work.
    if samples_per_step is None:
        samples_per_step = max(1, N // 2)
    Nb = max(1, min(int(samples_per_step), N))
    while N % Nb:
        Nb -= 1

    # Pad Cin up to the 8-sublane boundary so each per-tap patch is a full
    # (8, 128) tile (kills cross-sublane packing in the patch build).
    Cin_pad = max(8, ((Cin + 7) // 8) * 8)

    # Layout glue: NCHW -> (N, C, H*W) is a pure reshape (no transpose); the
    # channel zero-pad is a tiny XLA pad.  Weights flattened to
    # (Cout, KH*KW*Cin_pad), tap-major / channel-minor, zero-padded channels.
    x_flat = x_nchw.reshape(N, Cin, HW)
    if Cin_pad != Cin:
        x_flat = jnp.pad(x_flat, ((0, 0), (0, Cin_pad - Cin), (0, 0)))
    w_t = jnp.transpose(w_oihw, (0, 2, 3, 1))          # (Cout, KH, KW, Cin)
    if Cin_pad != Cin:
        w_t = jnp.pad(w_t, ((0, 0), (0, 0), (0, 0), (0, Cin_pad - Cin)))
    w_flat = w_t.reshape(Cout, KH * KW * Cin_pad)

    kernel = functools.partial(_block_kernel, Nb=Nb, H=H, W=W, KH=KH, KW=KW,
                               pad=padding, matmul_dtype=matmul_dtype)

    out_flat = pl.pallas_call(
        kernel,
        out_shape=jax.ShapeDtypeStruct((N, Cout, HW), x_nchw.dtype),
        grid_spec=pltpu.PrefetchScalarGridSpec(
            num_scalar_prefetch=0,
            grid=(N // Nb,),                 # Nb samples per program
            in_specs=[
                pl.BlockSpec((Nb, Cin_pad, HW), lambda n: (n, 0, 0)),
                pl.BlockSpec((Cout, KH * KW * Cin_pad), lambda n: (0, 0)),
            ],
            out_specs=pl.BlockSpec((Nb, Cout, HW), lambda n: (n, 0, 0)),
        ),
        compiler_params=pltpu.CompilerParams(
            dimension_semantics=("parallel",)),   # batch splits across TCs (v7x)
    )(x_flat, w_flat)

    return out_flat.reshape(N, Cout, H, W)


def block_reference(x_nchw, w_oihw, bias):
    """Pure-JAX reference (conv + bias + InstanceNorm2d + ReLU)."""
    out = jax.lax.conv_general_dilated(
        x_nchw, w_oihw, window_strides=(1, 1), padding=((1, 1), (1, 1)),
        dimension_numbers=("NCHW", "OIHW", "NCHW"))
    out = out + bias[None, :, None, None]
    mean = out.mean(axis=(2, 3), keepdims=True)
    var = ((out - mean) ** 2).mean(axis=(2, 3), keepdims=True)
    return jnp.maximum((out - mean) / jnp.sqrt(var + EPS), 0.0)


if __name__ == "__main__":
    # Small shapes consistent with the module: Block(in_=4, out=8,
    # kernel_size=3, stride=1, padding=1).
    Cin, Cout, H, W, K = 4, 8, 16, 16, 3

    key = jax.random.PRNGKey(0)
    kx, kw, kb = jax.random.split(key, 3)
    # Deterministic synthetic parameters (PyTorch Conv2d weight layout OIHW).
    fan_in = Cin * K * K
    bound = 1.0 / (fan_in ** 0.5)
    w = jax.random.uniform(kw, (Cout, Cin, K, K), jnp.float32, -bound, bound)
    b = jax.random.uniform(kb, (Cout,), jnp.float32, -bound, bound)

    ok = True
    # Check both the single-sample-per-step path (N=2 -> Nb=1, grid=2) and the
    # sample-batched path (N=4 -> Nb=2, grid=2, cross-sample row masks active).
    for N in (2, 4):
        x = jax.random.normal(kx, (N, Cin, H, W), dtype=jnp.float32)
        out = block_forward(x, w, b, padding=1)
        out = jax.block_until_ready(out)
        ref = block_reference(x, w, b)
        assert out.shape == (N, Cout, H, W), out.shape
        err = float(jnp.max(jnp.abs(out - ref)))
        ok = ok and bool(jnp.allclose(out, ref, rtol=1e-4, atol=1e-4))
        assert ok, err

    print("KERNEL_OK")
</pallas_src>

<mosaic_0001>
module attributes {stable_mosaic.version = 11 : i64} {
  func.func @_block_kernel(%arg0: i32, %arg1: memref<1x8x256xf32, #tpu.memory_space<vmem>>, %arg2: memref<8x72xf32, #tpu.memory_space<vmem>>, %arg3: memref<1x8x256xf32, #tpu.memory_space<vmem>>) attributes {dimension_semantics = [#tpu.dimension_semantics<parallel>], iteration_bounds = array<i64: 2>, scalar_prefetch = 0 : i64, scratch_operands = 0 : i64, tpu.core_type = #tpu.core_type<tc>, window_params = [{transform_indices = @transform_0, window_bounds = array<i64: 1, 8, 256>}, {pipeline_mode = #tpu.pipeline_mode<synchronous>, transform_indices = @transform_1, window_bounds = array<i64: 8, 72>}, {transform_indices = @transform_2, window_bounds = array<i64: 1, 8, 256>}]} {
    %c0 = arith.constant 0 : index
    %c0_0 = arith.constant 0 : index
    %c0_1 = arith.constant 0 : index
    %0 = vector.load %arg1[%c0, %c0_0, %c0_1] : memref<1x8x256xf32, #tpu.memory_space<vmem>>, vector<1x8x256xf32>
    %1 = vector.shape_cast %0 : vector<1x8x256xf32> to vector<8x256xf32>
    %cst = arith.constant 0.000000e+00 : f32
    %2 = vector.broadcast %cst : f32 to vector<8x128xf32>
    %3 = tpu.concatenate %2, %1, %2 in 1 : vector<8x128xf32>, vector<8x256xf32>, vector<8x128xf32> -> vector<8x512xf32>
    %4 = tpu.iota {dimensions = array<i32: 1>} : vector<8x256xi32>
    %c16_i32 = arith.constant 16 : i32
    %c0_i32 = arith.constant 0 : i32
    %5 = arith.cmpi eq, %c16_i32, %c0_i32 : i32
    %c1_i32 = arith.constant 1 : i32
    %6 = arith.select %5, %c1_i32, %c16_i32 : i32
    %7 = vector.broadcast %6 : i32 to vector<8x256xi32>
    %8 = arith.remsi %4, %7 : vector<8x256xi32>
    %c0_i32_2 = arith.constant 0 : i32
    %9 = vector.broadcast %c0_i32_2 : i32 to vector<8x256xi32>
    %10 = arith.cmpi ne, %8, %9 : vector<8x256xi32>
    %c0_i32_3 = arith.constant 0 : i32
    %11 = vector.broadcast %c0_i32_3 : i32 to vector<8x256xi32>
    %12 = arith.cmpi slt, %8, %11 : vector<8x256xi32>
    %c0_i32_4 = arith.constant 0 : i32
    %13 = arith.cmpi slt, %6, %c0_i32_4 : i32
    %14 = vector.broadcast %13 : i1 to vector<8x256xi1>
    %15 = vector.broadcast %14 : vector<8x256xi1> to vector<8x256xi1>
    %16 = arith.xori %12, %15 : vector<8x256xi1>
    %17 = arith.andi %16, %10 : vector<8x256xi1>
    %18 = vector.broadcast %6 : i32 to vector<8x256xi32>
    %19 = arith.addi %8, %18 : vector<8x256xi32>
    %20 = arith.select %17, %19, %8 : vector<8x256xi1>, vector<8x256xi32>
    %c1_i32_5 = arith.constant 1 : i32
    %21 = vector.broadcast %c1_i32_5 : i32 to vector<8x256xi32>
    %22 = arith.cmpi sge, %20, %21 : vector<8x256xi32>
    %c15_i32 = arith.constant 15 : i32
    %23 = vector.broadcast %c15_i32 : i32 to vector<8x256xi32>
    %24 = arith.cmpi slt, %20, %23 : vector<8x256xi32>
    %25 = vector.extract_strided_slice %3 {offsets = [0, 111], sizes = [8, 256], strides = [1, 1]} : vector<8x512xf32> to vector<8x256xf32>
    %cst_6 = arith.constant 0.000000e+00 : f32
    %26 = vector.broadcast %cst_6 : f32 to vector<8x256xf32>
    %27 = arith.select %22, %25, %26 : vector<8x256xi1>, vector<8x256xf32>
    %28 = vector.extract_strided_slice %3 {offsets = [0, 112], sizes = [8, 256], strides = [1, 1]} : vector<8x512xf32> to vector<8x256xf32>
    %29 = vector.extract_strided_slice %3 {offsets = [0, 113], sizes = [8, 256], strides = [1, 1]} : vector<8x512xf32> to vector<8x256xf32>
    %cst_7 = arith.constant 0.000000e+00 : f32
    %30 = vector.broadcast %cst_7 : f32 to vector<8x256xf32>
    %31 = arith.select %24, %29, %30 : vector<8x256xi1>, vector<8x256xf32>
    %32 = vector.extract_strided_slice %3 {offsets = [0, 127], sizes = [8, 256], strides = [1, 1]} : vector<8x512xf32> to vector<8x256xf32>
    %cst_8 = arith.constant 0.000000e+00 : f32
    %33 = vector.broadcast %cst_8 : f32 to vector<8x256xf32>
    %34 = arith.select %22, %32, %33 : vector<8x256xi1>, vector<8x256xf32>
    %35 = vector.extract_strided_slice %3 {offsets = [0, 128], sizes = [8, 256], strides = [1, 1]} : vector<8x512xf32> to vector<8x256xf32>
    %36 = vector.extract_strided_slice %3 {offsets = [0, 129], sizes = [8, 256], strides = [1, 1]} : vector<8x512xf32> to vector<8x256xf32>
    %cst_9 = arith.constant 0.000000e+00 : f32
    %37 = vector.broadcast %cst_9 : f32 to vector<8x256xf32>
    %38 = arith.select %24, %36, %37 : vector<8x256xi1>, vector<8x256xf32>
    %39 = vector.extract_strided_slice %3 {offsets = [0, 143], sizes = [8, 256], strides = [1, 1]} : vector<8x512xf32> to vector<8x256xf32>
    %cst_10 = arith.constant 0.000000e+00 : f32
    %40 = vector.broadcast %cst_10 : f32 to vector<8x256xf32>
    %41 = arith.select %22, %39, %40 : vector<8x256xi1>, vector<8x256xf32>
    %42 = vector.extract_strided_slice %3 {offsets = [0, 144], sizes = [8, 256], strides = [1, 1]} : vector<8x512xf32> to vector<8x256xf32>
    %43 = vector.extract_strided_slice %3 {offsets = [0, 145], sizes = [8, 256], strides = [1, 1]} : vector<8x512xf32> to vector<8x256xf32>
    %cst_11 = arith.constant 0.000000e+00 : f32
    %44 = vector.broadcast %cst_11 : f32 to vector<8x256xf32>
    %45 = arith.select %24, %43, %44 : vector<8x256xi1>, vector<8x256xf32>
    %46 = tpu.concatenate %27, %28, %31, %34, %35, %38, %41, %42, %45 in 0 : vector<8x256xf32>, vector<8x256xf32>, vector<8x256xf32>, vector<8x256xf32>, vector<8x256xf32>, vector<8x256xf32>, vector<8x256xf32>, vector<8x256xf32>, vector<8x256xf32> -> vector<72x256xf32>
    %c0_12 = arith.constant 0 : index
    %c0_13 = arith.constant 0 : index
    %47 = vector.load %arg2[%c0_12, %c0_13] : memref<8x72xf32, #tpu.memory_space<vmem>>, vector<8x72xf32>
    %cst_14 = arith.constant dense<0.000000e+00> : vector<8x256xf32>
    %48 = tpu.matmul %47, %46, %cst_14 {dimension_numbers = #tpu.dot_dimension_numbers<[1], [0], [0], [1], [0, 0, 1, 1], [], []>} : vector<8x72xf32>, vector<72x256xf32>, vector<8x256xf32> -> vector<8x256xf32>
    %cst_15 = arith.constant dense<0.000000e+00> : vector<8xf32>
    %49 = vector.multi_reduction <add>, %48, %cst_15 [1] : vector<8x256xf32> to vector<8xf32>
    %50 = vector.shape_cast %49 : vector<8xf32> to vector<8x1xf32>
    %cst_16 = arith.constant 2.560000e+02 : f32
    %51 = vector.broadcast %cst_16 : f32 to vector<8x1xf32>
    %52 = arith.divf %50, %51 : vector<8x1xf32>
    %53 = vector.broadcast %52 : vector<8x1xf32> to vector<8x256xf32>
    %54 = arith.subf %48, %53 : vector<8x256xf32>
    %55 = arith.mulf %54, %54 : vector<8x256xf32>
    %cst_17 = arith.constant dense<0.000000e+00> : vector<8xf32>
    %56 = vector.multi_reduction <add>, %55, %cst_17 [1] : vector<8x256xf32> to vector<8xf32>
    %57 = vector.shape_cast %56 : vector<8xf32> to vector<8x1xf32>
    %cst_18 = arith.constant 2.560000e+02 : f32
    %58 = vector.broadcast %cst_18 : f32 to vector<8x1xf32>
    %59 = arith.divf %57, %58 : vector<8x1xf32>
    %cst_19 = arith.constant 9.99999974E-6 : f32
    %60 = vector.broadcast %cst_19 : f32 to vector<8x1xf32>
    %61 = arith.addf %59, %60 : vector<8x1xf32>
    %62 = math.rsqrt %61 : vector<8x1xf32>
    %63 = vector.broadcast %62 : vector<8x1xf32> to vector<8x256xf32>
    %64 = arith.mulf %54, %63 : vector<8x256xf32>
    %cst_20 = arith.constant 0.000000e+00 : f32
    %65 = vector.broadcast %cst_20 : f32 to vector<8x256xf32>
    %66 = arith.maximumf %64, %65 : vector<8x256xf32>
    %c0_21 = arith.constant 0 : index
    %c0_22 = arith.constant 0 : index
    %c0_23 = arith.constant 0 : index
    %67 = vector.load %arg3[%c0_21, %c0_22, %c0_23] : memref<1x8x256xf32, #tpu.memory_space<vmem>>, vector<1x8x256xf32>
    %68 = vector.shape_cast %67 : vector<1x8x256xf32> to vector<8x256xf32>
    %69 = vector.shape_cast %66 : vector<8x256xf32> to vector<1x8x256xf32>
    tpu.vector_store %arg3[%c0_21, %c0_22, %c0_23], %69 {strides = array<i32>} : memref<1x8x256xf32, #tpu.memory_space<vmem>>, vector<1x8x256xf32>,
    return
  }
  func.func @transform_0(%arg0: i32) -> (i32, i32, i32) {
    %c0_i32 = arith.constant 0 : i32
    %c0_i32_0 = arith.constant 0 : i32
    %c0_i32_1 = arith.constant 0 : i32
    return %arg0, %c0_i32, %c0_i32_0 : i32, i32, i32
  }
  func.func @transform_1(%arg0: i32) -> (i32, i32) {
    %c0_i32 = arith.constant 0 : i32
    %c0_i32_0 = arith.constant 0 : i32
    %c0_i32_1 = arith.constant 0 : i32
    return %c0_i32, %c0_i32_0 : i32, i32
  }
  func.func @transform_2(%arg0: i32) -> (i32, i32, i32) {
    %c0_i32 = arith.constant 0 : i32
    %c0_i32_0 = arith.constant 0 : i32
    %c0_i32_1 = arith.constant 0 : i32
    return %arg0, %c0_i32, %c0_i32_0 : i32, i32, i32
  }
}

</mosaic_0001>

<llo_original>
// kernel: tpu_custom_call.1
$region0: #{tpu_custom_call.1}
  #allocation0 [shape = 'u32[]', space=smem, size = 0x4, offset = 0x4, fixed_abs, tag = 'smem constant byte address 0x4 - core index']
  #allocation1 [shape = 'u32[72,128]{1,0:T(1,128)}', space=vmem, size = 0x9000, scoped, tag = 'internal scratch']
  %s0 = inlined_call_operand.hbm [shape: f32[2,8,256], index: 0, kind: input, shape index: {}]
  %s1 = inlined_call_operand.hbm [shape: f32[8,72], index: 1, kind: input, shape index: {}]
  %s2 = inlined_call_operand.hbm [shape: f32[2,8,256], index: 2, kind: output, shape index: {}]
  %s3 = sld [smem:[#allocation0]]
  $region49: #{tpu_custom_call.1} parent=0
    _
  %s5 = ssub.s32 1, %s3
  %s6 = scalar_select 0, %s5, %s3
  $region1: #{tpu_custom_call.1} parent=0
    #allocation2 [shape = 'u8[16384]{0}', space=vmem, size = 0x4000, scoped, tag = 'input window, operand 0']
    #allocation3 [shape = 's32[2]{0}', space=sflag, size = 0x8, scoped, tag = 'scoped memory for tpu_custom_call.1']
    #allocation4 [shape = 's32[2]{0}', space=sflag, size = 0x8, scoped, tag = 'scoped memory for tpu_custom_call.1']
    #allocation5 [shape = 'u8[4096]{0}', space=vmem, size = 0x1000, scoped, tag = 'input window, operand 1, single buffered']
    #allocation6 [shape = 's32[1]{0}', space=sflag, size = 0x4, scoped, tag = 'scoped memory for tpu_custom_call.1']
    #allocation7 [shape = 'u8[16384]{0}', space=vmem, size = 0x4000, scoped, tag = 'output window, operand 0']
    %7 = vsyncpa [#allocation3], 0
    %s8 = scalar_lea.sflag [#allocation3], 1
    %9 = vsyncpa %s8, 0
    %10 = vsyncpa [#allocation6], 0
    %11 = vsyncpa [#allocation4], 0
    %s12 = scalar_lea.sflag [#allocation4], 1
    %13 = vsyncpa %s12, 0
    loop: start=0, step=1, limit=4
    $region2: #{tpu_custom_call.1} parent=1 // loop_pre_header
      _
    $region3: #{tpu_custom_call.1} parent=1 // loop_header
      %s15 = sphi 0, %s19
      %p16 = scmp.ge.s32.totalorder %s15, 4
      %s25 = sphi 0, %s27
      %s28 = sphi 0, %s25
      %s29 = sphi 0, %s28
      %s45 = sphi 0, %s29
      %s49 = sphi 0, %s49
      %s51 = sphi 0, %s49
      %s52 = sphi 0, %s51
      %s66 = sphi 0, %s52
      %s72 = sphi 0, %s74
      %s75 = sphi 0, %s72
      %s76 = sphi 0, %s75
      %s92 = sphi 0, %s76
    $region4: #{tpu_custom_call.1} parent=1 // loop_header_branch
      %18 = sbr.rel (%p16) target = $region8
    $region5: #{tpu_custom_call.1} parent=1 // loop_body
      %s20 = ssub.s32 %s15, 1
      %s21 = ssub.s32 %s15, 2
      %s22 = sadd.s32 %s15, 1
      %s23 = ssub.s32 %s15, %s22
      %p24 = scmp.eq.s32.totalorder %s23, 0
      %s26 = sadd.s32 %s25, 1
      %s27 = scalar_select %p24, %s25, %s26
      %p30 = pneg %p24
      %p31 = scmp.eq.s32.totalorder %s15, 1
      %p32 = por %p30, %p31
      %p33 = scmp.ne.s32.totalorder %s25, %s28
      %p34 = scmp.eq.s32.totalorder %s15, 0
      %p35 = por %p33, %p34
      %p36 = scmp.ne.s32.totalorder %s25, %s28
      %p37 = scmp.eq.s32.totalorder %s20, 1
      %p38 = por %p36, %p37
      %p39 = scmp.ne.s32.totalorder %s28, %s29
      %p40 = scmp.eq.s32.totalorder %s20, 0
      %p41 = por %p39, %p40
      %p42 = scmp.ne.s32.totalorder %s28, %s29
      %p43 = scmp.eq.s32.totalorder %s21, 1
      %p44 = por %p42, %p43
      %p46 = scmp.ne.s32.totalorder %s29, %s45
      %p47 = scmp.eq.s32.totalorder %s21, 0
      %p48 = por %p46, %p47
      %s50 = sadd.s32 %s49, 1
      %p53 = scmp.eq.s32.totalorder %s15, 1
      %p54 = scmp.ne.s32.totalorder %s49, %s51
      %p55 = scmp.eq.s32.totalorder %s15, 0
      %p56 = por %p54, %p55
      %p57 = scmp.ne.s32.totalorder %s49, %s51
      %p58 = scmp.eq.s32.totalorder %s20, 1
      %p59 = por %p57, %p58
      %p60 = scmp.ne.s32.totalorder %s51, %s52
      %p61 = scmp.eq.s32.totalorder %s20, 0
      %p62 = por %p60, %p61
      %p63 = scmp.ne.s32.totalorder %s51, %s52
      %p64 = scmp.eq.s32.totalorder %s21, 1
      %p65 = por %p63, %p64
      %p67 = scmp.ne.s32.totalorder %s52, %s66
      %p68 = scmp.eq.s32.totalorder %s21, 0
      %p69 = por %p67, %p68
      %s70 = ssub.s32 %s15, %s22
      %p71 = scmp.eq.s32.totalorder %s70, 0
      %s73 = sadd.s32 %s72, 1
      %s74 = scalar_select %p71, %s72, %s73
      %p77 = pneg %p71
      %p78 = scmp.eq.s32.totalorder %s15, 1
      %p79 = por %p77, %p78
      %p80 = scmp.ne.s32.totalorder %s72, %s75
      %p81 = scmp.eq.s32.totalorder %s15, 0
      %p82 = por %p80, %p81
      %p83 = scmp.ne.s32.totalorder %s72, %s75
      %p84 = scmp.eq.s32.totalorder %s20, 1
      %p85 = por %p83, %p84
      %p86 = scmp.ne.s32.totalorder %s75, %s76
      %p87 = scmp.eq.s32.totalorder %s20, 0
      %p88 = por %p86, %p87
      %p89 = scmp.ne.s32.totalorder %s75, %s76
      %p90 = scmp.eq.s32.totalorder %s21, 1
      %p91 = por %p89, %p90
      %p93 = scmp.ne.s32.totalorder %s76, %s92
      %p94 = scmp.eq.s32.totalorder %s21, 0
      %p95 = por %p93, %p94
      %p96 = scmp.le.s32.totalorder 1, %s15
      %p97 = scmp.lt.s32.totalorder %s15, 3
      %p98 = pnand %p96, %p97
      %p99 = pneg %p98
      // Predicated region
      $region9: #{tpu_custom_call.1} parent=5 // pred_check
        _
      $region10: #{tpu_custom_call.1} parent=5 // pred_check_branch
        %101 = sbr.rel (%p98) target = $region12
      $region11: #{tpu_custom_call.1} parent=5 // pred_region
        %s102 = ssub.s32 %s15, 1
        // Predicated region
        $region13: #{tpu_custom_call.1} parent=11 // pred_check
          %p103 = pneg %p62
        $region14: #{tpu_custom_call.1} parent=11 // pred_check_branch
          %105 = sbr.rel (%p103) target = $region16
        $region15: #{tpu_custom_call.1} parent=11 // pred_region
          %107 = vsyncadd [#allocation6], 0
          %s109 = sshll.u32 %s1, 4
          %s110 = int_to_ptr.hbm [resolvable:$true] %s109
          %s111 = sshll.u32 [#allocation5], 4
          %s112 = int_to_ptr.vmem [resolvable:$true] %s111
          %114 = dma.hbm_to_vmem [thread:$0]  %s110, 128, %s112, [#allocation6]
        $region16: #{tpu_custom_call.1} parent=11 // pred_fallthru
          _
      $region12: #{tpu_custom_call.1} parent=5 // pred_fallthru
        _
      %p115 = scmp.lt.s32.totalorder %s15, 2
      // Predicated region
      $region17: #{tpu_custom_call.1} parent=5 // pred_check
        %p116 = pneg %p115
      $region18: #{tpu_custom_call.1} parent=5 // pred_check_branch
        %118 = sbr.rel (%p116) target = $region20
      $region19: #{tpu_custom_call.1} parent=5 // pred_region
        // Predicated region
        $region21: #{tpu_custom_call.1} parent=19 // pred_check
          %p119 = pneg %p35
        $region22: #{tpu_custom_call.1} parent=19 // pred_check_branch
          %121 = sbr.rel (%p119) target = $region24
        $region23: #{tpu_custom_call.1} parent=19 // pred_region
          %s122 = sand.u32 %s25, 1
          %s123 = scalar_lea.sflag [#allocation3], %s122
          %s124 = sand.u32 %s25, 1
          %s125 = smul.addr %s124, 16
          %s126 = scalar_lea.vmem [#allocation2], %s125
          %128 = vsyncadd %s123, 0
          %s129 = smul.addr %s15, 2
          %s130 = smul.addr %s129, 8
          %s131 = scalar_lea.hbm %s0, %s130
          %s133 = sshll.u32 %s131, 4
          %s134 = int_to_ptr.hbm [resolvable:$true] %s133
          %s135 = sshll.u32 %s126, 4
          %s136 = int_to_ptr.vmem [resolvable:$true] %s135
          %138 = dma.hbm_to_vmem [thread:$0]  %s134, 256, %s136, %s123
        $region24: #{tpu_custom_call.1} parent=19 // pred_fallthru
          _
      $region20: #{tpu_custom_call.1} parent=5 // pred_fallthru
        _
      %p139 = scmp.le.s32.totalorder 1, %s15
      %p140 = scmp.lt.s32.totalorder %s15, 3
      %p141 = pnand %p139, %p140
      %p142 = pneg %p141
      // Predicated region
      $region25: #{tpu_custom_call.1} parent=5 // pred_check
        _
      $region26: #{tpu_custom_call.1} parent=5 // pred_check_branch
        %144 = sbr.rel (%p141) target = $region28
      $region27: #{tpu_custom_call.1} parent=5 // pred_region
        %s145 = ssub.s32 %s15, 1
        %s146 = sand.u32 %s28, 1
        %s147 = scalar_lea.sflag [#allocation3], %s146
        %s148 = sand.u32 %s28, 1
        %s149 = smul.addr %s148, 16
        %s150 = scalar_lea.vmem [#allocation2], %s149
        // Predicated region
        $region29: #{tpu_custom_call.1} parent=27 // pred_check
          %p151 = pneg %p41
        $region30: #{tpu_custom_call.1} parent=27 // pred_check_branch
          %153 = sbr.rel (%p151) target = $region32
        $region31: #{tpu_custom_call.1} parent=27 // pred_region
          %155 = dma.done %s147, 256
        $region32: #{tpu_custom_call.1} parent=27 // pred_fallthru
          _
        // Predicated region
        $region33: #{tpu_custom_call.1} parent=27 // pred_check
          %p156 = pneg %p62
        $region34: #{tpu_custom_call.1} parent=27 // pred_check_branch
          %158 = sbr.rel (%p156) target = $region36
        $region35: #{tpu_custom_call.1} parent=27 // pred_region
          %160 = dma.done [#allocation6], 128
        $region36: #{tpu_custom_call.1} parent=27 // pred_fallthru
          _
        %s161 = sand.u32 %s28, 1
        %s162 = scalar_lea.sflag [#allocation3], %s161
        %s163 = sand.u32 %s28, 1
        %s164 = smul.addr %s163, 16
        %s165 = scalar_lea.vmem [#allocation2], %s164
        %p166 = pneg %p41
        %p167 = pneg %p38
        %p168 = pneg %p62
        %p169 = pneg %p59
        %p170 = pneg %p88
        %p171 = pneg %p85
        %s172 = sand.u32 %s75, 1
        %s173 = scalar_lea.sflag [#allocation4], %s172
        %s174 = sand.u32 %s75, 1
        %s175 = smul.addr %s174, 16
        %s176 = scalar_lea.vmem [#allocation7], %s175
        %v177 = vld [vmem:[%s150] sm:$0xff]
        %v178 = vld [vmem:[%s150 + $0x8] sm:$0xff]
        %v179 = vlaneseq
        %v180 = vand.u32 %v179, 127
        %v181 = vadd.s32 %v180, 128
        %vm182 = vcmp.lt.s32.totalorder %v180, 0
        %v183 = vsub.s32 0, %v180
        %v184 = vsel %vm182, %v183, %v180
        %v185 = vshrl.u32 %v184, 4
        %v186 = vand.u32 %v184, 15
        %v187 = vsub.s32 0, %v186
        %v188 = vsel %vm182, %v187, %v186
        %vm189 = vcmp.lt.s32.totalorder %v181, 0
        %v190 = vsub.s32 0, %v181
        %v191 = vsel %vm189, %v190, %v181
        %v192 = vshrl.u32 %v191, 4
        %v193 = vand.u32 %v191, 15
        %v194 = vsub.s32 0, %v193
        %v195 = vsel %vm189, %v194, %v193
        %vm196 = vcmp.ne.s32.totalorder %v188, 0
        %vm197 = vcmp.ne.s32.totalorder %v195, 0
        %vm198 = vcmp.lt.s32.totalorder %v188, 0
        %vm199 = vcmp.lt.s32.totalorder %v195, 0
        %vm200 = vmand %vm198, %vm196
        %vm201 = vmand %vm199, %vm197
        %v202 = vadd.s32 %v188, 16
        %v203 = vadd.s32 %v195, 16
        %v204 = vsel %vm200, %v202, %v188
        %v205 = vsel %vm201, %v203, %v195
        %vm206 = vcmp.ge.s32.totalorder %v204, 1
        %vm207 = vcmp.ge.s32.totalorder %v205, 1
        %vm208 = vcmp.lt.s32.totalorder %v204, 15
        %vm209 = vcmp.lt.s32.totalorder %v205, 15
        %213 = vrot.lane.b32.xlu0 0.0, 17
        %v214 = vpop.permute.xlu0 %213
        %215 = vrot.lane.b32.xlu0 %v177, 17
        %v216 = vpop.permute.xlu0 %215
        %217 = vrot.lane.b32.xlu0 %v178, 17
        %v218 = vpop.permute.xlu0 %217
        %vm219 = vcmask 138240
        %v220 = vsel %vm219, %v214, %v216
        %v221 = vsel %vm219, %v216, %v218
        %v224 = vsel %vm206, %v220, 0.0
        %v225 = vsel %vm207, %v221, 0.0
        %226 = vrot.lane.b32.xlu0 0.0, 15
        %v227 = vpop.permute.xlu0 %226
        %228 = vrot.lane.b32.xlu0 %v177, 15
        %v229 = vpop.permute.xlu0 %228
        %230 = vrot.lane.b32.xlu0 %v178, 15
        %v231 = vpop.permute.xlu0 %230
        %vm232 = vcmask 121856
        %v233 = vsel %vm232, %v227, %v229
        %v234 = vsel %vm232, %v229, %v231
        %v237 = vsel %vm208, %v233, 0.0
        %v238 = vsel %vm209, %v234, 0.0
        %239 = vrot.lane.b32.xlu0 0.0, 1
        %v240 = vpop.permute.xlu0 %239
        %241 = vrot.lane.b32.xlu0 %v177, 1
        %v242 = vpop.permute.xlu0 %241
        %243 = vrot.lane.b32.xlu0 %v178, 1
        %v244 = vpop.permute.xlu0 %243
        %vm245 = vcmask 7168
        %v246 = vsel %vm245, %v240, %v242
        %v247 = vsel %vm245, %v242, %v244
        %v250 = vsel %vm206, %v246, 0.0
        %v251 = vsel %vm207, %v247, 0.0
        %252 = vrot.lane.b32.xlu0 %v177, 127
        %v253 = vpop.permute.xlu0 %252
        %254 = vrot.lane.b32.xlu0 %v178, 127
        %v255 = vpop.permute.xlu0 %254
        %256 = vrot.lane.b32.xlu0 0.0, 127
        %v257 = vpop.permute.xlu0 %256
        %vm258 = vcmask 1039360
        %v259 = vsel %vm258, %v253, %v255
        %v260 = vsel %vm258, %v255, %v257
        %v263 = vsel %vm208, %v259, 0.0
        %v264 = vsel %vm209, %v260, 0.0
        %265 = vrot.lane.b32.xlu0 %v177, 113
        %v266 = vpop.permute.xlu0 %265
        %267 = vrot.lane.b32.xlu0 %v178, 113
        %v268 = vpop.permute.xlu0 %267
        %269 = vrot.lane.b32.xlu0 0.0, 113
        %v270 = vpop.permute.xlu0 %269
        %vm271 = vcmask 924672
        %v272 = vsel %vm271, %v266, %v268
        %v273 = vsel %vm271, %v268, %v270
        %v276 = vsel %vm206, %v272, 0.0
        %v277 = vsel %vm207, %v273, 0.0
        %278 = vrot.lane.b32.xlu0 %v177, 111
        %v279 = vpop.permute.xlu0 %278
        %280 = vrot.lane.b32.xlu0 %v178, 111
        %v281 = vpop.permute.xlu0 %280
        %282 = vrot.lane.b32.xlu0 0.0, 111
        %v283 = vpop.permute.xlu0 %282
        %vm284 = vcmask 908288
        %v285 = vsel %vm284, %v279, %v281
        %v286 = vsel %vm284, %v281, %v283
        %v289 = vsel %vm208, %v285, 0.0
        %v290 = vsel %vm209, %v286, 0.0
        %291 = vrot.lane.b32.xlu0 0.0, 16
        %v292 = vpop.permute.xlu0 %291
        %293 = vrot.lane.b32.xlu0 %v177, 16
        %v294 = vpop.permute.xlu0 %293
        %295 = vrot.lane.b32.xlu0 %v178, 16
        %v296 = vpop.permute.xlu0 %295
        %vm297 = vcmask 130048
        %v298 = vsel %vm297, %v292, %v294
        %v299 = vsel %vm297, %v294, %v296
        %302 = vrot.lane.b32.xlu0 %v177, 112
        %v303 = vpop.permute.xlu0 %302
        %304 = vrot.lane.b32.xlu0 %v178, 112
        %v305 = vpop.permute.xlu0 %304
        %306 = vrot.lane.b32.xlu0 0.0, 112
        %v307 = vpop.permute.xlu0 %306
        %vm308 = vcmask 916480
        %v309 = vsel %vm308, %v303, %v305
        %v310 = vsel %vm308, %v305, %v307
        %v313 = vld [vmem:[#allocation5] sm:$0xff]
        %vm314 = vcmask 588800
        %v316 = vsel %vm314, %v313, 0
        %318 = vmatpush.msra.mxu0 0.0
        %319 = vmatpush.msra.mxu0 0.0
        %320 = vmatpush.msra.mxu0 0.0
        %321 = vmatpush.msra.mxu0 0.0
        %322 = vmatpush.msra.mxu0 0.0
        %323 = vmatpush.msra.mxu0 0.0
        %324 = vmatpush.msra.mxu0 0.0
        %325 = vmatpush.msra.mxu0 %v289
        %326 = vmatpush.msra.mxu0 %v309
        %327 = vmatpush.msra.mxu0 %v276
        %328 = vmatpush.msra.mxu0 %v263
        %329 = vmatpush.msra.mxu0 %v177
        %330 = vmatpush.msra.mxu0 %v250
        %331 = vmatpush.msra.mxu0 %v237
        %332 = vmatpush.msra.mxu0 %v298
        %333 = vmatpush.msra.mxu0 %v224
        %334 = vmatmul.f32.gmra.mxu0 %v316
        %v335 = vpop.f32.mrf.mxu0
        %v336 = vadd.f32 0.0, %v335
        %337 = vdwg.mxu0
        %338 = vmatpush.msra.mxu0 0.0
        %339 = vmatpush.msra.mxu0 0.0
        %340 = vmatpush.msra.mxu0 0.0
        %341 = vmatpush.msra.mxu0 0.0
        %342 = vmatpush.msra.mxu0 0.0
        %343 = vmatpush.msra.mxu0 0.0
        %344 = vmatpush.msra.mxu0 0.0
        %345 = vmatpush.msra.mxu0 %v290
        %346 = vmatpush.msra.mxu0 %v310
        %347 = vmatpush.msra.mxu0 %v277
        %348 = vmatpush.msra.mxu0 %v264
        %349 = vmatpush.msra.mxu0 %v178
        %350 = vmatpush.msra.mxu0 %v251
        %351 = vmatpush.msra.mxu0 %v238
        %352 = vmatpush.msra.mxu0 %v299
        %353 = vmatpush.msra.mxu0 %v225
        %354 = vmatmul.f32.gmra.mxu0 %v316
        %v355 = vpop.f32.mrf.mxu0
        %v356 = vadd.f32 0.0, %v355
        %357 = vdwg.mxu0
        %v358 = vadd.f32 %v336, %v356
        %359 = vadd.xlane.f32.xlu0 %v358
        %v360 = vpop.xlane.xlu0 %359
        %v361 = vrcp.pop 256.0
        %v362 = vmul.f32 256.0, %v361
        %v363 = vsub.f32 1.0, %v362
        %v364 = vmul.f32 %v361, %v363
        %v365 = vadd.f32 %v361, %v364
        %vm366 = vweird.f32 %v361
        %v367 = vsel %vm366, %v361, %v365
        %v368 = vmul.f32 %v360, %v367
        %v369 = vsub.f32 %v336, %v368
        %v370 = vsub.f32 %v356, %v368
        %v371 = vmul.f32 %v369, %v369
        %v372 = vmul.f32 %v370, %v370
        %v373 = vadd.f32 %v371, %v372
        %374 = vadd.xlane.f32.xlu0 %v373
        %v375 = vpop.xlane.xlu0 %374
        %v376 = vmul.f32 %v375, %v367
        %v377 = vadd.f32 %v376, 1e-05
        %v378 = vrsqrt.pop %v377
        %v379 = vmul.f32 %v378, %v377
        %v380 = vmul.f32 %v379, %v378
        %v381 = vmul.f32 0.5, %v380
        %v382 = vsub.f32 1.5, %v381
        %v383 = vmul.f32 %v378, %v382
        %vm384 = vweird.f32 %v377
        %vm385 = vweird.f32 %v378
        %vm386 = vmor %vm384, %vm385
        %v387 = vsel %vm386, %v378, %v383
        %v388 = vmul.f32 %v369, %v387
        %v389 = vmul.f32 %v370, %v387
        %v390 = vmax.f32 %v388, 0.0
        %v391 = vmax.f32 %v389, 0.0
        %392 = vst [vmem:[%s176] sm:$0xff] %v390
        %393 = vst [vmem:[%s176 + $0x8] sm:$0xff] %v391
        %s394 = sand.u32 %s75, 1
        %s395 = scalar_lea.sflag [#allocation4], %s394
        %s396 = sand.u32 %s75, 1
        %s397 = smul.addr %s396, 16
        %s398 = scalar_lea.vmem [#allocation7], %s397
        // Predicated region
        $region37: #{tpu_custom_call.1} parent=27 // pred_check
          %p399 = pneg %p85
        $region38: #{tpu_custom_call.1} parent=27 // pred_check_branch
          %401 = sbr.rel (%p399) target = $region40
        $region39: #{tpu_custom_call.1} parent=27 // pred_region
          %403 = vsyncadd %s395, 0
          %s404 = smul.addr %s20, 2
          %s405 = smul.addr %s404, 8
          %s406 = scalar_lea.hbm %s2, %s405
          %s408 = sshll.u32 %s398, 4
          %s409 = int_to_ptr.vmem [resolvable:$true] %s408
          %s410 = sshll.u32 %s406, 4
          %s411 = int_to_ptr.hbm [resolvable:$true] %s410
          %413 = dma.vmem_to_hbm [thread:$0]  %s409, 256, %s411, %s395
        $region40: #{tpu_custom_call.1} parent=27 // pred_fallthru
          _
      $region28: #{tpu_custom_call.1} parent=5 // pred_fallthru
        _
      %p414 = scmp.le.s32.totalorder 2, %s15
      // Predicated region
      $region41: #{tpu_custom_call.1} parent=5 // pred_check
        %p415 = pneg %p414
      $region42: #{tpu_custom_call.1} parent=5 // pred_check_branch
        %417 = sbr.rel (%p415) target = $region44
      $region43: #{tpu_custom_call.1} parent=5 // pred_region
        %s418 = ssub.s32 %s15, 2
        // Predicated region
        $region45: #{tpu_custom_call.1} parent=43 // pred_check
          %p419 = pneg %p91
        $region46: #{tpu_custom_call.1} parent=43 // pred_check_branch
          %421 = sbr.rel (%p419) target = $region48
        $region47: #{tpu_custom_call.1} parent=43 // pred_region
          %s422 = sand.u32 %s76, 1
          %s423 = scalar_lea.sflag [#allocation4], %s422
          %s424 = sand.u32 %s76, 1
          %s425 = smul.addr %s424, 16
          %s426 = scalar_lea.vmem [#allocation7], %s425
          %428 = dma.done %s423, 256
        $region48: #{tpu_custom_call.1} parent=43 // pred_fallthru
          _
      $region44: #{tpu_custom_call.1} parent=5 // pred_fallthru
        _
    $region6: #{tpu_custom_call.1} parent=1 // loop_footer
      %s19 = sadd.s32 1, %s15
    $region7: #{tpu_custom_call.1} parent=1 // loop_footer_branch
      %14 = sbr.rel target = $region3
    $region8: #{tpu_custom_call.1} parent=1 // loop_exit
      _
    %429 = vsyncpa [#allocation3], 1
    %s430 = scalar_lea.sflag [#allocation3], 1
    %431 = vsyncpa %s430, 1
    %432 = vsyncpa [#allocation6], 1
    %433 = vsyncpa [#allocation4], 1
    %s434 = scalar_lea.sflag [#allocation4], 1
    %435 = vsyncpa %s434, 1

</llo_original>
